<compile_context>
chip_gen: v7x
topology: tpu7x:2x2x1
jax: 0.10.0
libtpu: 0.0.40
codegen_flags: <defaults>
</compile_context>

<pallas_src>
import math

import jax
import jax.numpy as jnp
from jax.experimental import pallas as pl
from jax.experimental.pallas import tpu as pltpu


_LANE = 128
_MIB = 1024 * 1024
# Soft floor on per-stream bytes per grid step: big enough that the ~0.35 us
# fixed per-step cost stays small even at v7x HBM bandwidth (~3.2 TB/s / TC).
_TARGET_BYTES_PER_STREAM = 4 * _MIB
# Soft target for number of grid steps (pipelining), hard minimum of 2 so the
# "parallel" grid axis can shard across v7x's two TensorCores.
_DESIRED_GRID_STEPS = 8
_MIN_GRID_STEPS = 2


def _weighted_sum_kernel(w_ref, *refs):
    # w_ref : SMEM (N,) f32 scalar weights
    # refs  : (x_ref_0, ..., x_ref_{N-1}, o_ref) VMEM tiles of shape (tile_m, tile_d)
    x_refs, o_ref = refs[:-1], refs[-1]
    n = len(x_refs)

    # Hoist SMEM scalar loads off the critical path.
    ws = [w_ref[i] for i in range(n)]

    # Static unrolled accumulate in f32 (N is small). The binding resource is
    # HBM DMA on every generation, so this VPU work is free filler — do NOT
    # move it to the MXU or drop accumulation to bf16.
    acc = x_refs[0][...].astype(jnp.float32) * ws[0]
    for i in range(1, n):
        acc = acc + x_refs[i][...].astype(jnp.float32) * ws[i]
    o_ref[...] = acc.astype(o_ref.dtype)
    # TODO(synk): for very large N (>~16) switch to a chunked unroll to bound
    # code size / vreg live ranges.


def _round_down(x, mult):
    return (x // mult) * mult


def _vmem_budget_and_cap():
    """(per-step VMEM working-set budget, vmem_limit cap) by TPU generation."""
    phys = None
    try:
        phys = getattr(pltpu.get_tpu_info(), "vmem_capacity_bytes", None)
    except Exception:
        phys = None
    if phys is None:
        phys = 64 * _MIB            # conservative: assume v7x (smallest VMEM)
    if phys >= 128 * _MIB:          # v5e / v6e: 128 MiB physical, 16/32 MiB scoped default
        return 64 * _MIB, 96 * _MIB
    return 32 * _MIB, 48 * _MIB     # v7x: 64 MiB physical per TensorCore


def _pick_tiles(n_inputs, m, d, itemsize, vmem_budget_bytes):
    """Pick (tile_m, tile_d): sublane/lane aligned, VMEM-safe, bandwidth-friendly."""
    sublane = max(8, 32 // itemsize)      # 8 rows f32, 16 bf16, 32 for 8-bit dtypes
    streams = 2 * (n_inputs + 1)          # double-buffered, N inputs + 1 output

    # Lane-axis (D) tiling fallback: only when even `sublane` rows at the full
    # row width would blow the budget (very large N*D).
    tile_d = d
    if (streams * sublane * d * itemsize > vmem_budget_bytes
            and d > _LANE and d % _LANE == 0):
        lanes_fit = vmem_budget_bytes // (streams * sublane * itemsize)
        tile_d = min(d, max(_LANE, _round_down(lanes_fit, _LANE)))

    if m <= sublane:
        return m, tile_d              # full-array row dim is always legal

    row_bytes = tile_d * itemsize
    # Hard cap: double-buffered working set must fit the budget.
    rows_by_vmem = max(sublane, vmem_budget_bytes // (streams * row_bytes))
    # Soft floor: enough rows to reach the per-stream bytes-per-step target.
    rows_by_target = max(sublane, (_TARGET_BYTES_PER_STREAM + row_bytes - 1) // row_bytes)
    # Soft cap: leave ~_DESIRED_GRID_STEPS steps for pipelining/megacore.
    rows_by_desired_split = m // _DESIRED_GRID_STEPS

    tile_m = min(m, rows_by_vmem, max(rows_by_target, rows_by_desired_split))
    # Hard requirement: at least _MIN_GRID_STEPS steps whenever m allows it,
    # so both v7x TensorCores pull from HBM.
    if m >= _MIN_GRID_STEPS * sublane:
        tile_m = min(tile_m, m // _MIN_GRID_STEPS)
    tile_m = max(sublane, _round_down(tile_m, sublane))
    return (m if tile_m >= m else tile_m), tile_d


def linear_weighted_avg(inputs, weights, *, tile_rows=None, tile_cols=None,
                        vmem_budget_bytes=None):
    """inputs: list of N same-shape/dtype arrays; weights: (N,) learned scalars."""
    inputs = list(inputs)
    n = len(inputs)
    assert n >= 1
    shape = inputs[0].shape
    dtype = inputs[0].dtype
    for x in inputs[1:]:
        assert x.shape == shape and x.dtype == dtype, "all inputs must match"
    itemsize = jnp.dtype(dtype).itemsize
    total = math.prod(shape) if shape else 1

    # ---- canonicalize to a lane-dense 2-D (M, D) slab -----------------------
    # The op is elementwise, so any reshape preserves semantics; a last dim
    # that is a multiple of 128 keeps output stores unmasked (the biggest
    # single measured layout lever).
    if len(shape) == 2 and shape[-1] % _LANE == 0:
        work_shape = shape
    elif total % _LANE == 0:
        work_shape = (total // _LANE, _LANE)
    elif len(shape) >= 2:
        # TODO(synk): pad the last dim up to 128 instead; the block==full-dim
        # escape hatch below still lowers but with masked partial stores.
        work_shape = (total // shape[-1], shape[-1])
    else:
        work_shape = (1, total)

    xs = [x.reshape(work_shape) for x in inputs] if work_shape != shape else inputs
    m, d = work_shape

    w = jnp.asarray(weights, dtype=jnp.float32).reshape(n)

    # ---- tiling policy -------------------------------------------------------
    budget, vmem_cap = _vmem_budget_and_cap()
    if vmem_budget_bytes is not None:
        budget = int(vmem_budget_bytes)
        vmem_cap = max(vmem_cap, budget)

    auto_m, auto_d = _pick_tiles(n, m, d, itemsize, budget)
    sublane = max(8, 32 // itemsize)
    if tile_rows is None:
        tile_m = auto_m
    else:
        tile_m = m if tile_rows >= m else max(sublane, _round_down(min(tile_rows, m), sublane))
    if tile_cols is None:
        tile_d = auto_d
    else:
        tile_d = d if tile_cols >= d else max(_LANE, _round_down(min(tile_cols, d), _LANE))

    grid = (pl.cdiv(m, tile_m), pl.cdiv(d, tile_d))

    # Explicit VMEM limit: >= the real double-buffered working set (+25% margin
    # where possible), capped at the per-generation physical-minus-headroom,
    # and above the 16/32 MiB scoped defaults.
    working_set = 2 * (n + 1) * tile_m * tile_d * itemsize
    vmem_limit = max(16 * _MIB, working_set * 5 // 4)
    vmem_limit = min(vmem_limit, vmem_cap)
    vmem_limit = max(vmem_limit, working_set)   # never below the working set

    tile_spec = pl.BlockSpec((tile_m, tile_d), lambda i, j: (i, j))
    in_specs = [pl.BlockSpec(memory_space=pltpu.MemorySpace.SMEM)] + [tile_spec] * n

    cost = pl.CostEstimate(
        flops=(2 * n - 1) * m * d,
        transcendentals=0,
        bytes_accessed=(n + 1) * m * d * itemsize,
    )

    out = pl.pallas_call(
        _weighted_sum_kernel,
        out_shape=jax.ShapeDtypeStruct((m, d), dtype),
        grid_spec=pltpu.PrefetchScalarGridSpec(
            num_scalar_prefetch=0,
            grid=grid,
            in_specs=in_specs,
            out_specs=pl.BlockSpec((tile_m, tile_d), lambda i, j: (i, j)),
        ),
        compiler_params=pltpu.CompilerParams(
            dimension_semantics=("parallel", "parallel"),
            vmem_limit_bytes=int(vmem_limit),
        ),
        cost_estimate=cost,
    )(w, *xs)

    return out.reshape(shape) if work_shape != shape else out


if __name__ == "__main__":
    key = jax.random.PRNGKey(0)
    n_inputs = 3
    batch, hidden = 8, 256                      # small, (8,128)-friendly shapes

    k_w, *k_x = jax.random.split(key, n_inputs + 1)
    # Deterministic stand-in for the module's per-input torch.randn(1) scalars.
    weights = jax.random.normal(k_w, (n_inputs,), dtype=jnp.float32)
    inputs = [jax.random.normal(k, (batch, hidden), dtype=jnp.float32) for k in k_x]

    out = linear_weighted_avg(inputs, weights)
    out = jax.block_until_ready(out)

    # Reference check in plain JAX.
    ref = sum(x * weights[i] for i, x in enumerate(inputs))
    assert out.shape == (batch, hidden)
    assert jnp.allclose(out, ref, atol=1e-5, rtol=1e-5)

    print("KERNEL_OK")
</pallas_src>

<mosaic_0001>
module attributes {stable_mosaic.version = 11 : i64} {
  func.func @_weighted_sum_kernel(%arg0: i32, %arg1: i32, %arg2: memref<3xf32, #tpu.memory_space<smem>>, %arg3: memref<8x256xf32, #tpu.memory_space<vmem>>, %arg4: memref<8x256xf32, #tpu.memory_space<vmem>>, %arg5: memref<8x256xf32, #tpu.memory_space<vmem>>, %arg6: memref<8x256xf32, #tpu.memory_space<vmem>>) attributes {dimension_semantics = [#tpu.dimension_semantics<parallel>, #tpu.dimension_semantics<parallel>], iteration_bounds = array<i64: 1, 1>, scalar_prefetch = 0 : i64, scratch_operands = 0 : i64, tpu.core_type = #tpu.core_type<tc>, window_params = [{transform_indices = @transform_0, window_bounds = array<i64: 3>}, {transform_indices = @transform_1, window_bounds = array<i64: 8, 256>}, {transform_indices = @transform_2, window_bounds = array<i64: 8, 256>}, {transform_indices = @transform_3, window_bounds = array<i64: 8, 256>}, {transform_indices = @transform_4, window_bounds = array<i64: 8, 256>}]} {
    %c0 = arith.constant 0 : index
    %0 = memref.load %arg2[%c0] : memref<3xf32, #tpu.memory_space<smem>>
    %c1 = arith.constant 1 : index
    %1 = memref.load %arg2[%c1] : memref<3xf32, #tpu.memory_space<smem>>
    %c2 = arith.constant 2 : index
    %2 = memref.load %arg2[%c2] : memref<3xf32, #tpu.memory_space<smem>>
    %c0_0 = arith.constant 0 : index
    %c0_1 = arith.constant 0 : index
    %3 = vector.load %arg3[%c0_0, %c0_1] : memref<8x256xf32, #tpu.memory_space<vmem>>, vector<8x256xf32>
    %4 = vector.broadcast %0 : f32 to vector<8x256xf32>
    %5 = arith.mulf %3, %4 : vector<8x256xf32>
    %c0_2 = arith.constant 0 : index
    %c0_3 = arith.constant 0 : index
    %6 = vector.load %arg4[%c0_2, %c0_3] : memref<8x256xf32, #tpu.memory_space<vmem>>, vector<8x256xf32>
    %7 = vector.broadcast %1 : f32 to vector<8x256xf32>
    %8 = arith.mulf %6, %7 : vector<8x256xf32>
    %9 = arith.addf %5, %8 : vector<8x256xf32>
    %c0_4 = arith.constant 0 : index
    %c0_5 = arith.constant 0 : index
    %10 = vector.load %arg5[%c0_4, %c0_5] : memref<8x256xf32, #tpu.memory_space<vmem>>, vector<8x256xf32>
    %11 = vector.broadcast %2 : f32 to vector<8x256xf32>
    %12 = arith.mulf %10, %11 : vector<8x256xf32>
    %13 = arith.addf %9, %12 : vector<8x256xf32>
    %c0_6 = arith.constant 0 : index
    %c0_7 = arith.constant 0 : index
    %14 = vector.load %arg6[%c0_6, %c0_7] : memref<8x256xf32, #tpu.memory_space<vmem>>, vector<8x256xf32>
    tpu.vector_store %arg6[%c0_6, %c0_7], %13 {strides = array<i32>} : memref<8x256xf32, #tpu.memory_space<vmem>>, vector<8x256xf32>,
    return
  }
  func.func @transform_0(%arg0: i32, %arg1: i32) -> i32 {
    %c0_i32 = arith.constant 0 : i32
    %c0_i32_0 = arith.constant 0 : i32
    return %c0_i32 : i32
  }
  func.func @transform_1(%arg0: i32, %arg1: i32) -> (i32, i32) {
    %c0_i32 = arith.constant 0 : i32
    return %arg0, %arg1 : i32, i32
  }
  func.func @transform_2(%arg0: i32, %arg1: i32) -> (i32, i32) {
    %c0_i32 = arith.constant 0 : i32
    return %arg0, %arg1 : i32, i32
  }
  func.func @transform_3(%arg0: i32, %arg1: i32) -> (i32, i32) {
    %c0_i32 = arith.constant 0 : i32
    return %arg0, %arg1 : i32, i32
  }
  func.func @transform_4(%arg0: i32, %arg1: i32) -> (i32, i32) {
    %c0_i32 = arith.constant 0 : i32
    return %arg0, %arg1 : i32, i32
  }
}

</mosaic_0001>

<llo_original>
// kernel: tpu_custom_call.1
$region0: #{tpu_custom_call.1}
  #allocation0 [shape = 'u32[]', space=smem, size = 0x4, offset = 0x4, fixed_abs, tag = 'smem constant byte address 0x4 - core index']
  #allocation1 [shape = 'u32[144,128]{1,0:T(1,128)}', space=vmem, size = 0x12000, scoped, tag = 'internal scratch']
  %s0 = inlined_call_operand.hbm [shape: f32[3], index: 0, kind: input, shape index: {}]
  %s1 = inlined_call_operand.hbm [shape: f32[8,256], index: 1, kind: input, shape index: {}]
  %s2 = inlined_call_operand.hbm [shape: f32[8,256], index: 2, kind: input, shape index: {}]
  %s3 = inlined_call_operand.hbm [shape: f32[8,256], index: 3, kind: input, shape index: {}]
  %s4 = inlined_call_operand.hbm [shape: f32[8,256], index: 4, kind: output, shape index: {}]
  %s5 = sld [smem:[#allocation0]]
  $region42: #{tpu_custom_call.1} parent=0
    _
  %s7 = ssub.s32 1, %s5
  %s8 = scalar_select 0, %s7, %s5
  $region1: #{tpu_custom_call.1} parent=0
    #allocation2 [shape = 'u8[512]{0}', space=smem, size = 0x200, scoped, tag = 'input window, operand 0, single buffered']
    #allocation3 [shape = 's32[1]{0}', space=sflag, size = 0x4, scoped, tag = 'scoped memory for tpu_custom_call.1']
    #allocation4 [shape = 's32[1]{0}', space=sflag, size = 0x4, scoped, tag = 'scoped memory for tpu_custom_call.1']
    #allocation5 [shape = 's32[1]{0}', space=sflag, size = 0x4, scoped, tag = 'scoped memory for tpu_custom_call.1']
    #allocation6 [shape = 'u8[8192]{0}', space=vmem, size = 0x2000, scoped, tag = 'input window, operand 1, single buffered']
    #allocation7 [shape = 'u8[8192]{0}', space=vmem, size = 0x2000, scoped, tag = 'input window, operand 2, single buffered']
    #allocation8 [shape = 's32[1]{0}', space=sflag, size = 0x4, scoped, tag = 'scoped memory for tpu_custom_call.1']
    #allocation9 [shape = 'u8[8192]{0}', space=vmem, size = 0x2000, scoped, tag = 'input window, operand 3, single buffered']
    #allocation10 [shape = 'u8[8192]{0}', space=vmem, size = 0x2000, scoped, tag = 'output window, operand 0, single buffered']
    %9 = vsyncpa [#allocation5], 0
    %10 = vsyncpa [#allocation3], 0
    %11 = vsyncpa [#allocation8], 0
    %12 = vsyncpa [#allocation4], 0
    // Predicated region
    $region2: #{tpu_custom_call.1} parent=1 // pred_check
      _
    $region3: #{tpu_custom_call.1} parent=1 // pred_check_branch
      %14 = sbr.rel (0) target = $region5
    $region4: #{tpu_custom_call.1} parent=1 // pred_region
      %s16 = ssub.s32 16, 16
      %17 = vsyncadd [#allocation5], %s16
      %20 = dma.hbm_to_smem %s0, 16, [#allocation2], [#allocation5]
    $region5: #{tpu_custom_call.1} parent=1 // pred_fallthru
      _
    // Predicated region
    $region6: #{tpu_custom_call.1} parent=1 // pred_check
      _
    $region7: #{tpu_custom_call.1} parent=1 // pred_check_branch
      %22 = sbr.rel (0) target = $region9
    $region8: #{tpu_custom_call.1} parent=1 // pred_region
      %s24 = ssub.s32 256, 256
      %25 = vsyncadd [#allocation3], %s24
      %s27 = sshll.u32 [#allocation6], 4
      %s28 = int_to_ptr.vmem [resolvable:$true] %s27
      %30 = dma.hbm_to_vmem [thread:$0]  %s1, 256, %s28, [#allocation3]
    $region9: #{tpu_custom_call.1} parent=1 // pred_fallthru
      _
    // Predicated region
    $region10: #{tpu_custom_call.1} parent=1 // pred_check
      _
    $region11: #{tpu_custom_call.1} parent=1 // pred_check_branch
      %32 = sbr.rel (0) target = $region13
    $region12: #{tpu_custom_call.1} parent=1 // pred_region
      %s34 = ssub.s32 256, 256
      %35 = vsyncadd [#allocation8], %s34
      %s37 = sshll.u32 [#allocation7], 4
      %s38 = int_to_ptr.vmem [resolvable:$true] %s37
      %40 = dma.hbm_to_vmem [thread:$0]  %s2, 256, %s38, [#allocation8]
    $region13: #{tpu_custom_call.1} parent=1 // pred_fallthru
      _
    // Predicated region
    $region14: #{tpu_custom_call.1} parent=1 // pred_check
      _
    $region15: #{tpu_custom_call.1} parent=1 // pred_check_branch
      %42 = sbr.rel (0) target = $region17
    $region16: #{tpu_custom_call.1} parent=1 // pred_region
      %s44 = ssub.s32 256, 256
      %45 = vsyncadd [#allocation8], %s44
      %s47 = sshll.u32 [#allocation9], 4
      %s48 = int_to_ptr.vmem [resolvable:$true] %s47
      %50 = dma.hbm_to_vmem [thread:$0]  %s3, 256, %s48, [#allocation8]
    $region17: #{tpu_custom_call.1} parent=1 // pred_fallthru
      _
    // Predicated region
    $region18: #{tpu_custom_call.1} parent=1 // pred_check
      _
    $region19: #{tpu_custom_call.1} parent=1 // pred_check_branch
      %52 = sbr.rel (0) target = $region21
    $region20: #{tpu_custom_call.1} parent=1 // pred_region
      %53 = dma.done [#allocation5], 16
    $region21: #{tpu_custom_call.1} parent=1 // pred_fallthru
      _
    // Predicated region
    $region22: #{tpu_custom_call.1} parent=1 // pred_check
      _
    $region23: #{tpu_custom_call.1} parent=1 // pred_check_branch
      %55 = sbr.rel (0) target = $region25
    $region24: #{tpu_custom_call.1} parent=1 // pred_region
      %56 = dma.done [#allocation3], 256
    $region25: #{tpu_custom_call.1} parent=1 // pred_fallthru
      _
    // Predicated region
    $region26: #{tpu_custom_call.1} parent=1 // pred_check
      _
    $region27: #{tpu_custom_call.1} parent=1 // pred_check_branch
      %58 = sbr.rel (0) target = $region29
    $region28: #{tpu_custom_call.1} parent=1 // pred_region
      %59 = dma.done [#allocation8], 256
    $region29: #{tpu_custom_call.1} parent=1 // pred_fallthru
      _
    // Predicated region
    $region30: #{tpu_custom_call.1} parent=1 // pred_check
      _
    $region31: #{tpu_custom_call.1} parent=1 // pred_check_branch
      %61 = sbr.rel (0) target = $region33
    $region32: #{tpu_custom_call.1} parent=1 // pred_region
      %62 = dma.done [#allocation8], 256
    $region33: #{tpu_custom_call.1} parent=1 // pred_fallthru
      _
    %63 = sfence
    %s64 = sld [smem:[#allocation2]]
    %s65 = sld [smem:[#allocation2 + $0x1]]
    %s66 = sld [smem:[#allocation2 + $0x2]]
    %v67 = vld [vmem:[#allocation6] sm:$0xff]
    %v68 = vld [vmem:[#allocation6 + $0x8] sm:$0xff]
    %v69 = vstv %s64
    %v70 = vmul.f32 %v67, %v69
    %v71 = vmul.f32 %v68, %v69
    %v72 = vld [vmem:[#allocation7] sm:$0xff]
    %v73 = vld [vmem:[#allocation7 + $0x8] sm:$0xff]
    %v74 = vstv %s65
    %v75 = vmul.f32 %v72, %v74
    %v76 = vmul.f32 %v73, %v74
    %v77 = vadd.f32 %v70, %v75
    %v78 = vadd.f32 %v71, %v76
    %v79 = vld [vmem:[#allocation9] sm:$0xff]
    %v80 = vld [vmem:[#allocation9 + $0x8] sm:$0xff]
    %v81 = vstv %s66
    %v82 = vmul.f32 %v79, %v81
    %v83 = vmul.f32 %v80, %v81
    %v84 = vadd.f32 %v77, %v82
    %v85 = vadd.f32 %v78, %v83
    %86 = vst [vmem:[#allocation10] sm:$0xff] %v84
    %87 = vst [vmem:[#allocation10 + $0x8] sm:$0xff] %v85
    // Predicated region
    $region34: #{tpu_custom_call.1} parent=1 // pred_check
      _
    $region35: #{tpu_custom_call.1} parent=1 // pred_check_branch
      %89 = sbr.rel (0) target = $region37
    $region36: #{tpu_custom_call.1} parent=1 // pred_region
      %s91 = ssub.s32 256, 256
      %92 = vsyncadd [#allocation4], %s91
      %s94 = sshll.u32 [#allocation10], 4
      %s95 = int_to_ptr.vmem [resolvable:$true] %s94
      %97 = dma.vmem_to_hbm [thread:$0]  %s95, 256, %s4, [#allocation4]
    $region37: #{tpu_custom_call.1} parent=1 // pred_fallthru
      _
    // Predicated region
    $region38: #{tpu_custom_call.1} parent=1 // pred_check
      _
    $region39: #{tpu_custom_call.1} parent=1 // pred_check_branch
      %99 = sbr.rel (0) target = $region41
    $region40: #{tpu_custom_call.1} parent=1 // pred_region
      %100 = dma.done [#allocation4], 256
    $region41: #{tpu_custom_call.1} parent=1 // pred_fallthru
      _
    %101 = vsyncpa [#allocation3], 1
    %102 = vsyncpa [#allocation8], 1
    %103 = vsyncpa [#allocation4], 1
    %104 = vsyncpa [#allocation5], 1

</llo_original>
